<compile_context>
chip_gen: v7x
topology: tpu7x:2x2x1
jax: 0.10.0
libtpu: 0.0.40
codegen_flags: <defaults>
</compile_context>

<pallas_src>
import functools

import jax
import jax.numpy as jnp
from jax import lax
from jax.experimental import pallas as pl
from jax.experimental.pallas import tpu as pltpu


def _value_kernel(x_ref,
                  w1T_ref, b1_ref,
                  w2T_ref, b2_ref,
                  w3T_ref, b3_ref,
                  w4_ref, b4_ref,
                  o_ref):
    """Fused 4-layer MLP.

    x_ref  : (tile, state_dim)   batch on sublanes as loaded from HBM
    w1T    : (units, state_dim)  layer-1 contraction is over the lane axis,
                                 so h comes out (units, tile): batch on lanes
    w2T/w3T: (units, units) f32
    bX     : (units, 1) f32      broadcast along lanes
    w4     : (units, 1), b4: (1, 1)  head done on VPU + XLU sublane-reduce
    o_ref  : (1, tile)           lane-dense value output
    """
    x = x_ref[...]
    if x.dtype != w1T_ref.dtype:
        x = x.astype(w1T_ref.dtype)            # cheap VPU cast of the tiny x tile

    # Layer 1: contract over the lane (state_dim) axis -> (units, tile).
    # (trans_b form: the small in-VMEM transpose goes to the XLU.)
    h = lax.dot_general(w1T_ref[...], x,
                        dimension_numbers=(((1,), (1,)), ((), ())),
                        preferred_element_type=jnp.float32)
    h = jnp.tanh(h + b1_ref[...])              # bias + tanh in f32 (EUP)

    # Layers 2 & 3: f32 operands (K is tiny; bf16 would add casts, save nothing).
    h = jnp.dot(w2T_ref[...], h, preferred_element_type=jnp.float32)
    h = jnp.tanh(h + b2_ref[...])
    h = jnp.dot(w3T_ref[...], h, preferred_element_type=jnp.float32)
    h = jnp.tanh(h + b3_ref[...])

    # Layer 4 (units -> 1): VPU broadcast-multiply + cross-sublane reduce.
    # Reduction is over features (sublanes) only, never across lanes (batch),
    # so ragged-last-block garbage lanes stay isolated.
    v = jnp.sum(h * w4_ref[...], axis=0, keepdims=True) + b4_ref[...]   # (1, tile)
    o_ref[...] = v.astype(o_ref.dtype)


def prepare_params(params, mm_dtype=jnp.float32):
    """One-time conversion of (w, b) pairs to kernel layout (outside the hot path).

    params: [(w1,b1),(w2,b2),(w3,b3),(w4,b4)] with w: (in, out), b: (1, out).
    mm_dtype controls only W1 (and the in-kernel x cast); bf16 is recommended on
    all generations (v5e/v6e/v7x) when states can be streamed as bf16.
    """
    (w1, b1), (w2, b2), (w3, b3), (w4, b4) = params
    return {
        "w1T": jnp.asarray(w1.T, mm_dtype),            # (units, state_dim)
        "b1":  jnp.asarray(b1.reshape(-1, 1), jnp.float32),
        "w2T": jnp.asarray(w2.T, jnp.float32),         # (units, units)
        "b2":  jnp.asarray(b2.reshape(-1, 1), jnp.float32),
        "w3T": jnp.asarray(w3.T, jnp.float32),         # (units, units)
        "b3":  jnp.asarray(b3.reshape(-1, 1), jnp.float32),
        "w4":  jnp.asarray(w4.reshape(-1, 1), jnp.float32),   # (units, 1)
        "b4":  jnp.asarray(b4.reshape(1, 1), jnp.float32),
    }


def _pick_tile(B, tile_m, units, state_dim, x_itemsize, w1_itemsize):
    """Lane-aligned batch tile: as large as possible, >=2 grid steps (v7x has
    2 TensorCores), working set within the default scoped-VMEM limit."""
    b_ceil = pl.cdiv(B, 128) * 128
    tile = max(128, (int(tile_m) // 128) * 128)
    tile = min(tile, b_ceil)
    if b_ceil >= 256 and pl.cdiv(B, tile) < 2:
        tile = max(128, ((b_ceil // 2) // 128) * 128)

    def vmem_bytes(t):
        x_bufs = 2 * t * state_dim * x_itemsize                    # double-buffered x
        weights = (units * state_dim * w1_itemsize
                   + 2 * units * units * 4
                   + (4 * units + 1) * 4)                           # resident params
        inter = 3 * units * t * 4                                   # live (units, t) f32
        out = 2 * t * 4
        return x_bufs + weights + inter + out

    budget = 24 * 1024 * 1024   # fits the 32 MiB default scoped limit everywhere
    while tile > 128 and vmem_bytes(tile) > budget:
        tile -= 128
    return tile


@functools.partial(jax.jit, static_argnames=("tile_m",))
def value_network(states, kernel_params, *, tile_m=2048):
    """states: [B, state_dim] (f32 or bf16) -> values: [B, 1] f32."""
    kp = kernel_params
    B, state_dim = states.shape
    units = kp["w1T"].shape[0]

    tile = _pick_tile(B, tile_m, units, state_dim,
                      states.dtype.itemsize, kp["w1T"].dtype.itemsize)
    grid = (pl.cdiv(B, tile),)
    rep = lambda i: (0, 0)   # weights/biases stay resident across the batch grid

    x_itemsize = states.dtype.itemsize
    w1_itemsize = kp["w1T"].dtype.itemsize
    weight_bytes = (units * state_dim * w1_itemsize
                    + 2 * units * units * 4 + (4 * units + 1) * 4)
    cost = pl.CostEstimate(
        flops=2 * B * (state_dim * units + 2 * units * units + units),
        transcendentals=3 * B * units,
        bytes_accessed=B * state_dim * x_itemsize + B * 4 + weight_bytes,
    )

    out = pl.pallas_call(
        _value_kernel,
        out_shape=jax.ShapeDtypeStruct((1, B), jnp.float32),
        grid_spec=pltpu.PrefetchScalarGridSpec(
            num_scalar_prefetch=0,
            grid=grid,
            in_specs=[
                pl.BlockSpec((tile, state_dim), lambda i: (i, 0)),  # x tile (ragged OK)
                pl.BlockSpec((units, state_dim), rep),              # W1^T
                pl.BlockSpec((units, 1), rep),                      # b1
                pl.BlockSpec((units, units), rep),                  # W2^T
                pl.BlockSpec((units, 1), rep),                      # b2
                pl.BlockSpec((units, units), rep),                  # W3^T
                pl.BlockSpec((units, 1), rep),                      # b3
                pl.BlockSpec((units, 1), rep),                      # W4
                pl.BlockSpec((1, 1), rep),                          # b4
            ],
            out_specs=pl.BlockSpec((1, tile), lambda i: (0, i)),    # lane-dense values
        ),
        compiler_params=pltpu.CompilerParams(
            dimension_semantics=("parallel",)),
        cost_estimate=cost,
    )(states, kp["w1T"], kp["b1"], kp["w2T"], kp["b2"],
      kp["w3T"], kp["b3"], kp["w4"], kp["b4"])

    return out[0, :].reshape(B, 1)


def init_params(key, state_dim, units):
    """Deterministic init mirroring torch.nn.Linear default U(-1/sqrt(fan_in), +).

    Weights stored as (in_features, out_features), biases as (1, out_features).
    """
    dims = [(state_dim, units), (units, units), (units, units), (units, 1)]
    params = []
    for (fan_in, fan_out) in dims:
        key, kw, kb = jax.random.split(key, 3)
        bound = 1.0 / jnp.sqrt(fan_in)
        w = jax.random.uniform(kw, (fan_in, fan_out), jnp.float32, -bound, bound)
        b = jax.random.uniform(kb, (1, fan_out), jnp.float32, -bound, bound)
        params.append((w, b))
    return params


def _reference(states, params):
    (w1, b1), (w2, b2), (w3, b3), (w4, b4) = params
    h = jnp.tanh(states @ w1 + b1)
    h = jnp.tanh(h @ w2 + b2)
    h = jnp.tanh(h @ w3 + b3)
    return h @ w4 + b4


if __name__ == "__main__":
    key = jax.random.PRNGKey(0)
    # Small test shapes; ragged batch (not a multiple of 128) exercises the
    # partial-last-block path (no wrapper-side pad).
    batch, state_dim, units = 300, 16, 32

    k_params, k_x = jax.random.split(key)
    params = init_params(k_params, state_dim, units)
    states = jax.random.normal(k_x, (batch, state_dim), jnp.float32)
    ref = _reference(states, params)

    # Full f32 path; default tile selection (clamped to >=2 grid steps for v7x).
    kp_f32 = prepare_params(params)
    out = jax.block_until_ready(value_network(states, kp_f32))
    assert out.shape == (batch, 1)
    assert jnp.allclose(out, ref, atol=1e-4, rtol=1e-4), "f32 mismatch vs reference"

    # bf16 W1 path (x tile cast in-kernel; halves input DMA when states are
    # streamed as bf16; tanh/bias/accumulation stay f32). Looser tolerance.
    kp_bf16 = prepare_params(params, mm_dtype=jnp.bfloat16)
    out_bf16 = jax.block_until_ready(value_network(states, kp_bf16, tile_m=128))
    assert out_bf16.shape == (batch, 1)
    assert jnp.allclose(out_bf16, ref, atol=5e-2, rtol=5e-2), "bf16 mismatch vs reference"

    print("KERNEL_OK")
</pallas_src>

<mosaic_0001>
module attributes {stable_mosaic.version = 11 : i64} {
  func.func @_value_kernel(%arg0: i32, %arg1: memref<128x16xf32, #tpu.memory_space<vmem>>, %arg2: memref<32x16xf32, #tpu.memory_space<vmem>>, %arg3: memref<32x1xf32, #tpu.memory_space<vmem>>, %arg4: memref<32x32xf32, #tpu.memory_space<vmem>>, %arg5: memref<32x1xf32, #tpu.memory_space<vmem>>, %arg6: memref<32x32xf32, #tpu.memory_space<vmem>>, %arg7: memref<32x1xf32, #tpu.memory_space<vmem>>, %arg8: memref<32x1xf32, #tpu.memory_space<vmem>>, %arg9: memref<1x1xf32, #tpu.memory_space<vmem>>, %arg10: memref<1x128xf32, #tpu.memory_space<vmem>>) attributes {dimension_semantics = [#tpu.dimension_semantics<parallel>], iteration_bounds = array<i64: 3>, scalar_prefetch = 0 : i64, scratch_operands = 0 : i64, tpu.core_type = #tpu.core_type<tc>, window_params = [{transform_indices = @transform_0, window_bounds = array<i64: 128, 16>}, {pipeline_mode = #tpu.pipeline_mode<synchronous>, transform_indices = @transform_1, window_bounds = array<i64: 32, 16>}, {pipeline_mode = #tpu.pipeline_mode<synchronous>, transform_indices = @transform_2, window_bounds = array<i64: 32, 1>}, {pipeline_mode = #tpu.pipeline_mode<synchronous>, transform_indices = @transform_3, window_bounds = array<i64: 32, 32>}, {pipeline_mode = #tpu.pipeline_mode<synchronous>, transform_indices = @transform_4, window_bounds = array<i64: 32, 1>}, {pipeline_mode = #tpu.pipeline_mode<synchronous>, transform_indices = @transform_5, window_bounds = array<i64: 32, 32>}, {pipeline_mode = #tpu.pipeline_mode<synchronous>, transform_indices = @transform_6, window_bounds = array<i64: 32, 1>}, {pipeline_mode = #tpu.pipeline_mode<synchronous>, transform_indices = @transform_7, window_bounds = array<i64: 32, 1>}, {pipeline_mode = #tpu.pipeline_mode<synchronous>, transform_indices = @transform_8, window_bounds = array<i64: 1, 1>}, {transform_indices = @transform_9, window_bounds = array<i64: 1, 128>}]} {
    %c0 = arith.constant 0 : index
    %c0_0 = arith.constant 0 : index
    %0 = vector.load %arg1[%c0, %c0_0] : memref<128x16xf32, #tpu.memory_space<vmem>>, vector<128x16xf32>
    %c0_1 = arith.constant 0 : index
    %c0_2 = arith.constant 0 : index
    %1 = vector.load %arg2[%c0_1, %c0_2] : memref<32x16xf32, #tpu.memory_space<vmem>>, vector<32x16xf32>
    %cst = arith.constant dense<0.000000e+00> : vector<32x128xf32>
    %2 = tpu.matmul %1, %0, %cst {dimension_numbers = #tpu.dot_dimension_numbers<[1], [1], [0], [0], [0, 0, 1, 0], [], []>} : vector<32x16xf32>, vector<128x16xf32>, vector<32x128xf32> -> vector<32x128xf32>
    %c0_3 = arith.constant 0 : index
    %c0_4 = arith.constant 0 : index
    %3 = vector.load %arg3[%c0_3, %c0_4] : memref<32x1xf32, #tpu.memory_space<vmem>>, vector<32x1xf32>
    %4 = vector.broadcast %3 : vector<32x1xf32> to vector<32x128xf32>
    %5 = arith.addf %2, %4 : vector<32x128xf32>
    %6 = math.tanh %5 : vector<32x128xf32>
    %c0_5 = arith.constant 0 : index
    %c0_6 = arith.constant 0 : index
    %7 = vector.load %arg4[%c0_5, %c0_6] : memref<32x32xf32, #tpu.memory_space<vmem>>, vector<32x32xf32>
    %cst_7 = arith.constant dense<0.000000e+00> : vector<32x128xf32>
    %8 = tpu.matmul %7, %6, %cst_7 {dimension_numbers = #tpu.dot_dimension_numbers<[1], [0], [0], [1], [0, 0, 1, 1], [], []>} : vector<32x32xf32>, vector<32x128xf32>, vector<32x128xf32> -> vector<32x128xf32>
    %c0_8 = arith.constant 0 : index
    %c0_9 = arith.constant 0 : index
    %9 = vector.load %arg5[%c0_8, %c0_9] : memref<32x1xf32, #tpu.memory_space<vmem>>, vector<32x1xf32>
    %10 = vector.broadcast %9 : vector<32x1xf32> to vector<32x128xf32>
    %11 = arith.addf %8, %10 : vector<32x128xf32>
    %12 = math.tanh %11 : vector<32x128xf32>
    %c0_10 = arith.constant 0 : index
    %c0_11 = arith.constant 0 : index
    %13 = vector.load %arg6[%c0_10, %c0_11] : memref<32x32xf32, #tpu.memory_space<vmem>>, vector<32x32xf32>
    %cst_12 = arith.constant dense<0.000000e+00> : vector<32x128xf32>
    %14 = tpu.matmul %13, %12, %cst_12 {dimension_numbers = #tpu.dot_dimension_numbers<[1], [0], [0], [1], [0, 0, 1, 1], [], []>} : vector<32x32xf32>, vector<32x128xf32>, vector<32x128xf32> -> vector<32x128xf32>
    %c0_13 = arith.constant 0 : index
    %c0_14 = arith.constant 0 : index
    %15 = vector.load %arg7[%c0_13, %c0_14] : memref<32x1xf32, #tpu.memory_space<vmem>>, vector<32x1xf32>
    %16 = vector.broadcast %15 : vector<32x1xf32> to vector<32x128xf32>
    %17 = arith.addf %14, %16 : vector<32x128xf32>
    %18 = math.tanh %17 : vector<32x128xf32>
    %c0_15 = arith.constant 0 : index
    %c0_16 = arith.constant 0 : index
    %19 = vector.load %arg8[%c0_15, %c0_16] : memref<32x1xf32, #tpu.memory_space<vmem>>, vector<32x1xf32>
    %20 = vector.broadcast %19 : vector<32x1xf32> to vector<32x128xf32>
    %21 = arith.mulf %18, %20 : vector<32x128xf32>
    %cst_17 = arith.constant dense<0.000000e+00> : vector<128xf32>
    %22 = vector.multi_reduction <add>, %21, %cst_17 [0] : vector<32x128xf32> to vector<128xf32>
    %23 = vector.shape_cast %22 : vector<128xf32> to vector<1x128xf32>
    %c0_18 = arith.constant 0 : index
    %c0_19 = arith.constant 0 : index
    %24 = vector.load %arg9[%c0_18, %c0_19] : memref<1x1xf32, #tpu.memory_space<vmem>>, vector<1x1xf32>
    %25 = vector.broadcast %24 : vector<1x1xf32> to vector<1x128xf32>
    %26 = arith.addf %23, %25 : vector<1x128xf32>
    %c0_20 = arith.constant 0 : index
    %c0_21 = arith.constant 0 : index
    %27 = vector.load %arg10[%c0_20, %c0_21] : memref<1x128xf32, #tpu.memory_space<vmem>>, vector<1x128xf32>
    tpu.vector_store %arg10[%c0_20, %c0_21], %26 {strides = array<i32>} : memref<1x128xf32, #tpu.memory_space<vmem>>, vector<1x128xf32>,
    return
  }
  func.func @transform_0(%arg0: i32) -> (i32, i32) {
    %c0_i32 = arith.constant 0 : i32
    %c0_i32_0 = arith.constant 0 : i32
    return %arg0, %c0_i32 : i32, i32
  }
  func.func @transform_1(%arg0: i32) -> (i32, i32) {
    %c0_i32 = arith.constant 0 : i32
    %c0_i32_0 = arith.constant 0 : i32
    %c0_i32_1 = arith.constant 0 : i32
    return %c0_i32, %c0_i32_0 : i32, i32
  }
  func.func @transform_2(%arg0: i32) -> (i32, i32) {
    %c0_i32 = arith.constant 0 : i32
    %c0_i32_0 = arith.constant 0 : i32
    %c0_i32_1 = arith.constant 0 : i32
    return %c0_i32, %c0_i32_0 : i32, i32
  }
  func.func @transform_3(%arg0: i32) -> (i32, i32) {
    %c0_i32 = arith.constant 0 : i32
    %c0_i32_0 = arith.constant 0 : i32
    %c0_i32_1 = arith.constant 0 : i32
    return %c0_i32, %c0_i32_0 : i32, i32
  }
  func.func @transform_4(%arg0: i32) -> (i32, i32) {
    %c0_i32 = arith.constant 0 : i32
    %c0_i32_0 = arith.constant 0 : i32
    %c0_i32_1 = arith.constant 0 : i32
    return %c0_i32, %c0_i32_0 : i32, i32
  }
  func.func @transform_5(%arg0: i32) -> (i32, i32) {
    %c0_i32 = arith.constant 0 : i32
    %c0_i32_0 = arith.constant 0 : i32
    %c0_i32_1 = arith.constant 0 : i32
    return %c0_i32, %c0_i32_0 : i32, i32
  }
  func.func @transform_6(%arg0: i32) -> (i32, i32) {
    %c0_i32 = arith.constant 0 : i32
    %c0_i32_0 = arith.constant 0 : i32
    %c0_i32_1 = arith.constant 0 : i32
    return %c0_i32, %c0_i32_0 : i32, i32
  }
  func.func @transform_7(%arg0: i32) -> (i32, i32) {
    %c0_i32 = arith.constant 0 : i32
    %c0_i32_0 = arith.constant 0 : i32
    %c0_i32_1 = arith.constant 0 : i32
    return %c0_i32, %c0_i32_0 : i32, i32
  }
  func.func @transform_8(%arg0: i32) -> (i32, i32) {
    %c0_i32 = arith.constant 0 : i32
    %c0_i32_0 = arith.constant 0 : i32
    %c0_i32_1 = arith.constant 0 : i32
    return %c0_i32, %c0_i32_0 : i32, i32
  }
  func.func @transform_9(%arg0: i32) -> (i32, i32) {
    %c0_i32 = arith.constant 0 : i32
    %c0_i32_0 = arith.constant 0 : i32
    return %c0_i32, %arg0 : i32, i32
  }
}

</mosaic_0001>

<llo_original>
// kernel: value_network.1
$region0: #{value_network.1}
  #allocation0 [shape = 'u32[]', space=smem, size = 0x4, offset = 0x4, fixed_abs, tag = 'smem constant byte address 0x4 - core index']
  #allocation1 [shape = 'u32[144,128]{1,0:T(1,128)}', space=vmem, size = 0x12000, scoped, tag = 'internal scratch']
  #allocation2 [shape = 'f32[1,1]{1,0:T(1,128)S(1)}', space=vmem, size = 0x200, scoped, tag = 'scoped memory for value_network.1']
  %s0 = inlined_call_operand.vmem [shape: f32[300,16], index: 0, kind: input, shape index: {}]
  %s1 = inlined_call_operand.vmem [shape: f32[32,16], index: 1, kind: input, shape index: {}]
  %s2 = inlined_call_operand.vmem [shape: f32[32,1], index: 2, kind: input, shape index: {}]
  %s3 = inlined_call_operand.vmem [shape: f32[32,32], index: 3, kind: input, shape index: {}]
  %s4 = inlined_call_operand.vmem [shape: f32[32,1], index: 4, kind: input, shape index: {}]
  %s5 = inlined_call_operand.vmem [shape: f32[32,32], index: 5, kind: input, shape index: {}]
  %s6 = inlined_call_operand.vmem [shape: f32[32,1], index: 6, kind: input, shape index: {}]
  %s7 = inlined_call_operand.vmem [shape: f32[32,1], index: 7, kind: input, shape index: {}]
  %s8 = inlined_call_operand.<no memory space> [shape: f32[1,1], index: 8, kind: input, shape index: {}]
  %s9 = inlined_call_operand.hbm [shape: f32[1,300], index: 9, kind: output, shape index: {}]
  %s10 = sld [smem:[#allocation0]]
  $region69: #{value_network.1} parent=0
    _
  %s12 = ssub.s32 1, %s10
  %s13 = scalar_select 0, %s12, %s10
  %v14 = vstv %s8
  %15 = vst [vmem:[#allocation2] sm:$0x1] %v14
  $region1: #{value_network.1} parent=0
    #allocation3 [shape = 'u8[1024]{0}', space=vmem, size = 0x400, scoped, tag = 'output window, operand 0']
    #allocation4 [shape = 's32[2]{0}', space=sflag, size = 0x8, scoped, tag = 'scoped memory for value_network.1']
    %16 = vsyncpa [#allocation4], 0
    %s17 = scalar_lea.sflag [#allocation4], 1
    %18 = vsyncpa %s17, 0
    loop: start=0, step=1, limit=5
    $region2: #{value_network.1} parent=1 // loop_pre_header
      _
    $region3: #{value_network.1} parent=1 // loop_header
      %s20 = sphi 0, %s24
      %p21 = scmp.ge.s32.totalorder %s20, 5
      %s30 = sphi 0, %s32
      %s33 = sphi 0, %s30
      %s34 = sphi 0, %s33
      %s50 = sphi 0, %s34
      %s54 = sphi 0, %s54
      %s56 = sphi 0, %s54
      %s57 = sphi 0, %s56
      %s71 = sphi 0, %s57
      %s75 = sphi 0, %s75
      %s77 = sphi 0, %s75
      %s78 = sphi 0, %s77
      %s92 = sphi 0, %s78
      %s96 = sphi 0, %s96
      %s98 = sphi 0, %s96
      %s99 = sphi 0, %s98
      %s113 = sphi 0, %s99
      %s117 = sphi 0, %s117
      %s119 = sphi 0, %s117
      %s120 = sphi 0, %s119
      %s134 = sphi 0, %s120
      %s138 = sphi 0, %s138
      %s140 = sphi 0, %s138
      %s141 = sphi 0, %s140
      %s155 = sphi 0, %s141
      %s159 = sphi 0, %s159
      %s161 = sphi 0, %s159
      %s162 = sphi 0, %s161
      %s176 = sphi 0, %s162
      %s180 = sphi 0, %s180
      %s182 = sphi 0, %s180
      %s183 = sphi 0, %s182
      %s197 = sphi 0, %s183
      %s201 = sphi 0, %s201
      %s203 = sphi 0, %s201
      %s204 = sphi 0, %s203
      %s218 = sphi 0, %s204
      %s224 = sphi 0, %s226
      %s227 = sphi 0, %s224
      %s228 = sphi 0, %s227
      %s244 = sphi 0, %s228
    $region4: #{value_network.1} parent=1 // loop_header_branch
      %23 = sbr.rel (%p21) target = $region8
    $region5: #{value_network.1} parent=1 // loop_body
      %s25 = ssub.s32 %s20, 1
      %s26 = ssub.s32 %s20, 2
      %s27 = sadd.s32 %s20, 1
      %s28 = ssub.s32 %s20, %s27
      %p29 = scmp.eq.s32.totalorder %s28, 0
      %s31 = sadd.s32 %s30, 1
      %s32 = scalar_select %p29, %s30, %s31
      %p35 = pneg %p29
      %p36 = scmp.eq.s32.totalorder %s20, 2
      %p37 = por %p35, %p36
      %p38 = scmp.ne.s32.totalorder %s30, %s33
      %p39 = scmp.eq.s32.totalorder %s20, 0
      %p40 = por %p38, %p39
      %p41 = scmp.ne.s32.totalorder %s30, %s33
      %p42 = scmp.eq.s32.totalorder %s25, 2
      %p43 = por %p41, %p42
      %p44 = scmp.ne.s32.totalorder %s33, %s34
      %p45 = scmp.eq.s32.totalorder %s25, 0
      %p46 = por %p44, %p45
      %p47 = scmp.ne.s32.totalorder %s33, %s34
      %p48 = scmp.eq.s32.totalorder %s26, 2
      %p49 = por %p47, %p48
      %p51 = scmp.ne.s32.totalorder %s34, %s50
      %p52 = scmp.eq.s32.totalorder %s26, 0
      %p53 = por %p51, %p52
      %s55 = sadd.s32 %s54, 1
      %p58 = scmp.eq.s32.totalorder %s20, 2
      %p59 = scmp.ne.s32.totalorder %s54, %s56
      %p60 = scmp.eq.s32.totalorder %s20, 0
      %p61 = por %p59, %p60
      %p62 = scmp.ne.s32.totalorder %s54, %s56
      %p63 = scmp.eq.s32.totalorder %s25, 2
      %p64 = por %p62, %p63
      %p65 = scmp.ne.s32.totalorder %s56, %s57
      %p66 = scmp.eq.s32.totalorder %s25, 0
      %p67 = por %p65, %p66
      %p68 = scmp.ne.s32.totalorder %s56, %s57
      %p69 = scmp.eq.s32.totalorder %s26, 2
      %p70 = por %p68, %p69
      %p72 = scmp.ne.s32.totalorder %s57, %s71
      %p73 = scmp.eq.s32.totalorder %s26, 0
      %p74 = por %p72, %p73
      %s76 = sadd.s32 %s75, 1
      %p79 = scmp.eq.s32.totalorder %s20, 2
      %p80 = scmp.ne.s32.totalorder %s75, %s77
      %p81 = scmp.eq.s32.totalorder %s20, 0
      %p82 = por %p80, %p81
      %p83 = scmp.ne.s32.totalorder %s75, %s77
      %p84 = scmp.eq.s32.totalorder %s25, 2
      %p85 = por %p83, %p84
      %p86 = scmp.ne.s32.totalorder %s77, %s78
      %p87 = scmp.eq.s32.totalorder %s25, 0
      %p88 = por %p86, %p87
      %p89 = scmp.ne.s32.totalorder %s77, %s78
      %p90 = scmp.eq.s32.totalorder %s26, 2
      %p91 = por %p89, %p90
      %p93 = scmp.ne.s32.totalorder %s78, %s92
      %p94 = scmp.eq.s32.totalorder %s26, 0
      %p95 = por %p93, %p94
      %s97 = sadd.s32 %s96, 1
      %p100 = scmp.eq.s32.totalorder %s20, 2
      %p101 = scmp.ne.s32.totalorder %s96, %s98
      %p102 = scmp.eq.s32.totalorder %s20, 0
      %p103 = por %p101, %p102
      %p104 = scmp.ne.s32.totalorder %s96, %s98
      %p105 = scmp.eq.s32.totalorder %s25, 2
      %p106 = por %p104, %p105
      %p107 = scmp.ne.s32.totalorder %s98, %s99
      %p108 = scmp.eq.s32.totalorder %s25, 0
      %p109 = por %p107, %p108
      %p110 = scmp.ne.s32.totalorder %s98, %s99
      %p111 = scmp.eq.s32.totalorder %s26, 2
      %p112 = por %p110, %p111
      %p114 = scmp.ne.s32.totalorder %s99, %s113
      %p115 = scmp.eq.s32.totalorder %s26, 0
      %p116 = por %p114, %p115
      %s118 = sadd.s32 %s117, 1
      %p121 = scmp.eq.s32.totalorder %s20, 2
      %p122 = scmp.ne.s32.totalorder %s117, %s119
      %p123 = scmp.eq.s32.totalorder %s20, 0
      %p124 = por %p122, %p123
      %p125 = scmp.ne.s32.totalorder %s117, %s119
      %p126 = scmp.eq.s32.totalorder %s25, 2
      %p127 = por %p125, %p126
      %p128 = scmp.ne.s32.totalorder %s119, %s120
      %p129 = scmp.eq.s32.totalorder %s25, 0
      %p130 = por %p128, %p129
      %p131 = scmp.ne.s32.totalorder %s119, %s120
      %p132 = scmp.eq.s32.totalorder %s26, 2
      %p133 = por %p131, %p132
      %p135 = scmp.ne.s32.totalorder %s120, %s134
      %p136 = scmp.eq.s32.totalorder %s26, 0
      %p137 = por %p135, %p136
      %s139 = sadd.s32 %s138, 1
      %p142 = scmp.eq.s32.totalorder %s20, 2
      %p143 = scmp.ne.s32.totalorder %s138, %s140
      %p144 = scmp.eq.s32.totalorder %s20, 0
      %p145 = por %p143, %p144
      %p146 = scmp.ne.s32.totalorder %s138, %s140
      %p147 = scmp.eq.s32.totalorder %s25, 2
      %p148 = por %p146, %p147
      %p149 = scmp.ne.s32.totalorder %s140, %s141
      %p150 = scmp.eq.s32.totalorder %s25, 0
      %p151 = por %p149, %p150
      %p152 = scmp.ne.s32.totalorder %s140, %s141
      %p153 = scmp.eq.s32.totalorder %s26, 2
      %p154 = por %p152, %p153
      %p156 = scmp.ne.s32.totalorder %s141, %s155
      %p157 = scmp.eq.s32.totalorder %s26, 0
      %p158 = por %p156, %p157
      %s160 = sadd.s32 %s159, 1
      %p163 = scmp.eq.s32.totalorder %s20, 2
      %p164 = scmp.ne.s32.totalorder %s159, %s161
      %p165 = scmp.eq.s32.totalorder %s20, 0
      %p166 = por %p164, %p165
      %p167 = scmp.ne.s32.totalorder %s159, %s161
      %p168 = scmp.eq.s32.totalorder %s25, 2
      %p169 = por %p167, %p168
      %p170 = scmp.ne.s32.totalorder %s161, %s162
      %p171 = scmp.eq.s32.totalorder %s25, 0
      %p172 = por %p170, %p171
      %p173 = scmp.ne.s32.totalorder %s161, %s162
      %p174 = scmp.eq.s32.totalorder %s26, 2
      %p175 = por %p173, %p174
      %p177 = scmp.ne.s32.totalorder %s162, %s176
      %p178 = scmp.eq.s32.totalorder %s26, 0
      %p179 = por %p177, %p178
      %s181 = sadd.s32 %s180, 1
      %p184 = scmp.eq.s32.totalorder %s20, 2
      %p185 = scmp.ne.s32.totalorder %s180, %s182
      %p186 = scmp.eq.s32.totalorder %s20, 0
      %p187 = por %p185, %p186
      %p188 = scmp.ne.s32.totalorder %s180, %s182
      %p189 = scmp.eq.s32.totalorder %s25, 2
      %p190 = por %p188, %p189
      %p191 = scmp.ne.s32.totalorder %s182, %s183
      %p192 = scmp.eq.s32.totalorder %s25, 0
      %p193 = por %p191, %p192
      %p194 = scmp.ne.s32.totalorder %s182, %s183
      %p195 = scmp.eq.s32.totalorder %s26, 2
      %p196 = por %p194, %p195
      %p198 = scmp.ne.s32.totalorder %s183, %s197
      %p199 = scmp.eq.s32.totalorder %s26, 0
      %p200 = por %p198, %p199
      %s202 = sadd.s32 %s201, 1
      %p205 = scmp.eq.s32.totalorder %s20, 2
      %p206 = scmp.ne.s32.totalorder %s201, %s203
      %p207 = scmp.eq.s32.totalorder %s20, 0
      %p208 = por %p206, %p207
      %p209 = scmp.ne.s32.totalorder %s201, %s203
      %p210 = scmp.eq.s32.totalorder %s25, 2
      %p211 = por %p209, %p210
      %p212 = scmp.ne.s32.totalorder %s203, %s204
      %p213 = scmp.eq.s32.totalorder %s25, 0
      %p214 = por %p212, %p213
      %p215 = scmp.ne.s32.totalorder %s203, %s204
      %p216 = scmp.eq.s32.totalorder %s26, 2
      %p217 = por %p215, %p216
      %p219 = scmp.ne.s32.totalorder %s204, %s218
      %p220 = scmp.eq.s32.totalorder %s26, 0
      %p221 = por %p219, %p220
      %s222 = ssub.s32 %s20, %s27
      %p223 = scmp.eq.s32.totalorder %s222, 0
      %s225 = sadd.s32 %s224, 1
      %s226 = scalar_select %p223, %s224, %s225
      %p229 = pneg %p223
      %p230 = scmp.eq.s32.totalorder %s20, 2
      %p231 = por %p229, %p230
      %p232 = scmp.ne.s32.totalorder %s224, %s227
      %p233 = scmp.eq.s32.totalorder %s20, 0
      %p234 = por %p232, %p233
      %p235 = scmp.ne.s32.totalorder %s224, %s227
      %p236 = scmp.eq.s32.totalorder %s25, 2
      %p237 = por %p235, %p236
      %p238 = scmp.ne.s32.totalorder %s227, %s228
      %p239 = scmp.eq.s32.totalorder %s25, 0
      %p240 = por %p238, %p239
      %p241 = scmp.ne.s32.totalorder %s227, %s228
      %p242 = scmp.eq.s32.totalorder %s26, 2
      %p243 = por %p241, %p242
      %p245 = scmp.ne.s32.totalorder %s228, %s244
      %p246 = scmp.eq.s32.totalorder %s26, 0
      %p247 = por %p245, %p246
      %p248 = scmp.le.s32.totalorder 1, %s20
      %p249 = scmp.lt.s32.totalorder %s20, 4
      %p250 = pnand %p248, %p249
      %p251 = pneg %p250
      // Predicated region
      $region9: #{value_network.1} parent=5 // pred_check
        _
      $region10: #{value_network.1} parent=5 // pred_check_branch
        %253 = sbr.rel (%p250) target = $region12
      $region11: #{value_network.1} parent=5 // pred_region
        %s254 = ssub.s32 %s20, 1
        // Predicated region
        $region13: #{value_network.1} parent=11 // pred_check
          %p255 = pneg %p67
        $region14: #{value_network.1} parent=11 // pred_check_branch
          %257 = sbr.rel (%p255) target = $region16
        $region15: #{value_network.1} parent=11 // pred_region
          _
        $region16: #{value_network.1} parent=11 // pred_fallthru
          _
        // Predicated region
        $region17: #{value_network.1} parent=11 // pred_check
          %p258 = pneg %p88
        $region18: #{value_network.1} parent=11 // pred_check_branch
          %260 = sbr.rel (%p258) target = $region20
        $region19: #{value_network.1} parent=11 // pred_region
          _
        $region20: #{value_network.1} parent=11 // pred_fallthru
          _
        // Predicated region
        $region21: #{value_network.1} parent=11 // pred_check
          %p261 = pneg %p109
        $region22: #{value_network.1} parent=11 // pred_check_branch
          %263 = sbr.rel (%p261) target = $region24
        $region23: #{value_network.1} parent=11 // pred_region
          _
        $region24: #{value_network.1} parent=11 // pred_fallthru
          _
        // Predicated region
        $region25: #{value_network.1} parent=11 // pred_check
          %p264 = pneg %p130
        $region26: #{value_network.1} parent=11 // pred_check_branch
          %266 = sbr.rel (%p264) target = $region28
        $region27: #{value_network.1} parent=11 // pred_region
          _
        $region28: #{value_network.1} parent=11 // pred_fallthru
          _
        // Predicated region
        $region29: #{value_network.1} parent=11 // pred_check
          %p267 = pneg %p151
        $region30: #{value_network.1} parent=11 // pred_check_branch
          %269 = sbr.rel (%p267) target = $region32
        $region31: #{value_network.1} parent=11 // pred_region
          _
        $region32: #{value_network.1} parent=11 // pred_fallthru
          _
        // Predicated region
        $region33: #{value_network.1} parent=11 // pred_check
          %p270 = pneg %p172
        $region34: #{value_network.1} parent=11 // pred_check_branch
          %272 = sbr.rel (%p270) target = $region36
        $region35: #{value_network.1} parent=11 // pred_region
          _
        $region36: #{value_network.1} parent=11 // pred_fallthru
          _
        // Predicated region
        $region37: #{value_network.1} parent=11 // pred_check
          %p273 = pneg %p193
        $region38: #{value_network.1} parent=11 // pred_check_branch
          %275 = sbr.rel (%p273) target = $region40
        $region39: #{value_network.1} parent=11 // pred_region
          _
        $region40: #{value_network.1} parent=11 // pred_fallthru
          _
        // Predicated region
        $region41: #{value_network.1} parent=11 // pred_check
          %p276 = pneg %p214
        $region42: #{value_network.1} parent=11 // pred_check_branch
          %278 = sbr.rel (%p276) target = $region44
        $region43: #{value_network.1} parent=11 // pred_region
          _
        $region44: #{value_network.1} parent=11 // pred_fallthru
          _
      $region12: #{value_network.1} parent=5 // pred_fallthru
        _
      %p279 = scmp.lt.s32.totalorder %s20, 3
      // Predicated region
      $region45: #{value_network.1} parent=5 // pred_check
        %p280 = pneg %p279
      $region46: #{value_network.1} parent=5 // pred_check_branch
        %282 = sbr.rel (%p280) target = $region48
      $region47: #{value_network.1} parent=5 // pred_region
        // Predicated region
        $region49: #{value_network.1} parent=47 // pred_check
          %p283 = pneg %p40
        $region50: #{value_network.1} parent=47 // pred_check_branch
          %285 = sbr.rel (%p283) target = $region52
        $region51: #{value_network.1} parent=47 // pred_region
          %s286 = smul.u32 16, %s20
          %s287 = ssub.s32 38, %s286
          %p288 = scmp.lt.s32.totalorder %s287, 16
          %s289 = scalar_select %p288, %s287, 16
          %s290 = smul.u32 128, %s289
          %p291 = scmp.lt.s32.totalorder %s286, 37
          %s292 = scalar_select %p291, %s286, 37
          %s293 = smul.addr %s292, 8
          %s294 = scalar_lea.vmem %s0, %s293
          %s295 = smul.u32 16, %s20
          %s296 = ssub.s32 38, %s295
          %p297 = scmp.lt.s32.totalorder %s296, 16
          %s298 = scalar_select %p297, %s296, 16
          %s299 = smul.u32 128, %s298
        $region52: #{value_network.1} parent=47 // pred_fallthru
          _
      $region48: #{value_network.1} parent=5 // pred_fallthru
        _
      %p300 = scmp.le.s32.totalorder 1, %s20
      %p301 = scmp.lt.s32.totalorder %s20, 4
      %p302 = pnand %p300, %p301
      %p303 = pneg %p302
      // Predicated region
      $region53: #{value_network.1} parent=5 // pred_check
        _
      $region54: #{value_network.1} parent=5 // pred_check_branch
        %305 = sbr.rel (%p302) target = $region56
      $region55: #{value_network.1} parent=5 // pred_region
        %s306 = ssub.s32 %s20, 1
        %s307 = smul.u32 16, %s25
        %s308 = ssub.s32 38, %s307
        %p309 = scmp.lt.s32.totalorder %s308, 16
        %s310 = scalar_select %p309, %s308, 16
        %s311 = smul.u32 128, %s310
        %p312 = scmp.lt.s32.totalorder %s307, 37
        %s313 = scalar_select %p312, %s307, 37
        %s314 = smul.addr %s313, 8
        %s315 = scalar_lea.vmem %s0, %s314
        %p316 = pneg %p46
        %p317 = pneg %p43
        %p318 = pneg %p67
        %p319 = pneg %p64
        %p320 = pneg %p88
        %p321 = pneg %p85
        %p322 = pneg %p109
        %p323 = pneg %p106
        %p324 = pneg %p130
        %p325 = pneg %p127
        %p326 = pneg %p151
        %p327 = pneg %p148
        %p328 = pneg %p172
        %p329 = pneg %p169
        %p330 = pneg %p193
        %p331 = pneg %p190
        %p332 = pneg %p214
        %p333 = pneg %p211
        %p334 = pneg %p240
        %p335 = pneg %p237
        %s336 = sand.u32 %s227, 1
        %s337 = scalar_lea.sflag [#allocation4], %s336
        %s338 = sand.u32 %s227, 1
        %s339 = scalar_lea.vmem [#allocation3], %s338
        %s340 = smul.u32 16, %s25
        %s341 = ssub.s32 38, %s340
        %p342 = scmp.lt.s32.totalorder %s341, 16
        %s343 = scalar_select %p342, %s341, 16
        %s344 = smul.u32 128, %s343
        %p345 = scmp.lt.s32.totalorder %s340, 37
        %s346 = scalar_select %p345, %s340, 37
        %s347 = smul.addr %s346, 8
        %s348 = scalar_lea.vmem %s0, %s347
        %s349 = smul.u32 16, %s25
        %s350 = ssub.s32 38, %s349
        %p351 = scmp.lt.s32.totalorder %s350, 16
        %s352 = scalar_select %p351, %s350, 16
        %s353 = smul.u32 128, %s352
        %v354 = vld [vmem:[%s348] sm:$0xff]
        %v355 = vld [vmem:[%s348 + $0x8] sm:$0xff]
        %v356 = vld [vmem:[%s348 + $0x10] sm:$0xff]
        %v357 = vld [vmem:[%s348 + $0x18] sm:$0xff]
        %v358 = vld [vmem:[%s348 + $0x20] sm:$0xff]
        %v359 = vld [vmem:[%s348 + $0x28] sm:$0xff]
        %v360 = vld [vmem:[%s348 + $0x30] sm:$0xff]
        %v361 = vld [vmem:[%s348 + $0x38] sm:$0xff]
        %v362 = vld [vmem:[%s348 + $0x40] sm:$0xff]
        %v363 = vld [vmem:[%s348 + $0x48] sm:$0xff]
        %v364 = vld [vmem:[%s348 + $0x50] sm:$0xff]
        %v365 = vld [vmem:[%s348 + $0x58] sm:$0xff]
        %v366 = vld [vmem:[%s348 + $0x60] sm:$0xff]
        %v367 = vld [vmem:[%s348 + $0x68] sm:$0xff]
        %v368 = vld [vmem:[%s348 + $0x70] sm:$0xff]
        %v369 = vld [vmem:[%s348 + $0x78] sm:$0xff]
        %v370 = vld [vmem:[%s1] sm:$0xff]
        %v371 = vld [vmem:[%s1 + $0x8] sm:$0xff]
        %v372 = vld [vmem:[%s1 + $0x10] sm:$0xff]
        %v373 = vld [vmem:[%s1 + $0x18] sm:$0xff]
        %v374 = vld [vmem:[%s2] sm:$0xff]
        %v375 = vld [vmem:[%s2 + $0x8] sm:$0xff]
        %v376 = vld [vmem:[%s2 + $0x10] sm:$0xff]
        %v377 = vld [vmem:[%s2 + $0x18] sm:$0xff]
        %379 = vset.pattern.permute.xlu0 0
        %380 = vperm.xlu0 %379, %v374
        %v381 = vpop.permute.xlu0 %380
        %384 = vset.pattern.permute.xlu0 0
        %385 = vperm.xlu0 %384, %v375
        %v386 = vpop.permute.xlu0 %385
        %389 = vset.pattern.permute.xlu0 0
        %390 = vperm.xlu0 %389, %v376
        %v391 = vpop.permute.xlu0 %390
        %394 = vset.pattern.permute.xlu0 0
        %395 = vperm.xlu0 %394, %v377
        %v396 = vpop.permute.xlu0 %395
        %vm398 = vcmask 130048
        %v400 = vsel %vm398, %v370, 0
        %v403 = vsel %vm398, %v371, 0
        %v406 = vsel %vm398, %v372, 0
        %v409 = vsel %vm398, %v373, 0
        %v412 = vsel %vm398, %v354, 0
        %v415 = vsel %vm398, %v355, 0
        %v418 = vsel %vm398, %v356, 0
        %v421 = vsel %vm398, %v357, 0
        %v424 = vsel %vm398, %v358, 0
        %v427 = vsel %vm398, %v359, 0
        %v430 = vsel %vm398, %v360, 0
        %v433 = vsel %vm398, %v361, 0
        %v436 = vsel %vm398, %v362, 0
        %v439 = vsel %vm398, %v363, 0
        %v442 = vsel %vm398, %v364, 0
        %v445 = vsel %vm398, %v365, 0
        %v448 = vsel %vm398, %v366, 0
        %v451 = vsel %vm398, %v367, 0
        %v454 = vsel %vm398, %v368, 0
        %v457 = vsel %vm398, %v369, 0
        %459 = vmatprep.subr.mxu0 0.0
        %460 = vmatpush1.xpose.msra.mxu0 %v412
        %461 = vmatprep.subr.mxu0 0.0
        %462 = vmatpush1.xpose.msra.mxu0 %v415
        %463 = vmatprep.subr.mxu0 0.0
        %464 = vmatpush1.xpose.msra.mxu0 %v418
        %465 = vmatprep.subr.mxu0 0.0
        %466 = vmatpush1.xpose.msra.mxu0 %v421
        %467 = vmatprep.subr.mxu0 0.0
        %468 = vmatpush1.xpose.msra.mxu0 %v424
        %469 = vmatprep.subr.mxu0 0.0
        %470 = vmatpush1.xpose.msra.mxu0 %v427
        %471 = vmatprep.subr.mxu0 0.0
        %472 = vmatpush1.xpose.msra.mxu0 %v430
        %473 = vmatprep.subr.mxu0 0.0
        %474 = vmatpush1.xpose.msra.mxu0 %v433
        %475 = vmatprep.subr.mxu0 0.0
        %476 = vmatpush1.xpose.msra.mxu0 %v436
        %477 = vmatprep.subr.mxu0 0.0
        %478 = vmatpush1.xpose.msra.mxu0 %v439
        %479 = vmatprep.subr.mxu0 0.0
        %480 = vmatpush1.xpose.msra.mxu0 %v442
        %481 = vmatprep.subr.mxu0 0.0
        %482 = vmatpush1.xpose.msra.mxu0 %v445
        %483 = vmatprep.subr.mxu0 0.0
        %484 = vmatpush1.xpose.msra.mxu0 %v448
        %485 = vmatprep.subr.mxu0 0.0
        %486 = vmatpush1.xpose.msra.mxu0 %v451
        %487 = vmatprep.subr.mxu0 0.0
        %488 = vmatpush1.xpose.msra.mxu0 %v454
        %489 = vmatprep.subr.mxu0 0.0
        %490 = vmatpush1.xpose.msra.mxu0 %v457
        %491 = vmatprep.subr.mxu0 0.0
        %492 = vmatpush1.xpose.msra.mxu0 0.0
        %493 = vmatprep.subr.mxu0 0.0
        %494 = vmatpush1.xpose.msra.mxu0 0.0
        %495 = vmatprep.subr.mxu0 0.0
        %496 = vmatpush1.xpose.msra.mxu0 0.0
        %497 = vmatprep.subr.mxu0 0.0
        %498 = vmatpush1.xpose.msra.mxu0 0.0
        %499 = vmatprep.subr.mxu0 0.0
        %500 = vmatpush1.xpose.msra.mxu0 0.0
        %501 = vmatprep.subr.mxu0 0.0
        %502 = vmatpush1.xpose.msra.mxu0 0.0
        %503 = vmatprep.subr.mxu0 0.0
        %504 = vmatpush1.xpose.msra.mxu0 0.0
        %505 = vmatprep.subr.mxu0 0.0
        %506 = vmatpush1.xpose.msra.mxu0 0.0
        %507 = vmatprep.subr.mxu0 0.0
        %508 = vmatpush1.xpose.msra.mxu0 0.0
        %509 = vmatprep.subr.mxu0 0.0
        %510 = vmatpush1.xpose.msra.mxu0 0.0
        %511 = vmatprep.subr.mxu0 0.0
        %512 = vmatpush1.xpose.msra.mxu0 0.0
        %513 = vmatprep.subr.mxu0 0.0
        %514 = vmatpush1.xpose.msra.mxu0 0.0
        %515 = vmatprep.subr.mxu0 0.0
        %516 = vmatpush1.xpose.msra.mxu0 0.0
        %517 = vmatprep.subr.mxu0 0.0
        %518 = vmatpush1.xpose.msra.mxu0 0.0
        %519 = vmatprep.subr.mxu0 0.0
        %520 = vmatpush1.xpose.msra.mxu0 0.0
        %521 = vmatprep.subr.mxu0 0.0
        %522 = vmatpush1.xpose.msra.mxu0 0.0
        %523 = vmatprep.mubr.f32.mxu0 0.0
        %524 = vmatmul.mubr.f32.gmra.mrb[0].mxu0 %v400
        %v525 = vpop.f32.mrb[0].mxu0
        %v526 = vadd.f32 %v381, %v525
        %v527 = vpop.f32.mrb[0].mxu0
        %528 = vmatprep.mubr.f32.mxu0 0.0
        %529 = vmatmul.mubr.f32.gmra.mrb[0].mxu0 %v403
        %v530 = vpop.f32.mrb[0].mxu0
        %v531 = vadd.f32 %v386, %v530
        %v532 = vpop.f32.mrb[0].mxu0
        %533 = vmatprep.mubr.f32.mxu0 0.0
        %534 = vmatmul.mubr.f32.gmra.mrb[0].mxu0 %v406
        %v535 = vpop.f32.mrb[0].mxu0
        %v536 = vadd.f32 %v391, %v535
        %v537 = vpop.f32.mrb[0].mxu0
        %538 = vmatprep.mubr.f32.mxu0 0.0
        %539 = vmatmul.mubr.f32.gmra.mrb[0].mxu0 %v409
        %v540 = vpop.f32.mrb[0].mxu0
        %v541 = vadd.f32 %v396, %v540
        %v542 = vpop.f32.mrb[0].mxu0
        %543 = vdwg.mxu0
        %v544 = vtanh.pop %v526
        %v545 = vtanh.pop %v531
        %v546 = vtanh.pop %v536
        %v547 = vtanh.pop %v541
        %v548 = vld [vmem:[%s3] sm:$0xff]
        %v549 = vld [vmem:[%s3 + $0x8] sm:$0xff]
        %v550 = vld [vmem:[%s3 + $0x10] sm:$0xff]
        %v551 = vld [vmem:[%s3 + $0x18] sm:$0xff]
        %v552 = vld [vmem:[%s4] sm:$0xff]
        %v553 = vld [vmem:[%s4 + $0x8] sm:$0xff]
        %v554 = vld [vmem:[%s4 + $0x10] sm:$0xff]
        %v555 = vld [vmem:[%s4 + $0x18] sm:$0xff]
        %557 = vset.pattern.permute.xlu0 0
        %558 = vperm.xlu0 %557, %v552
        %v559 = vpop.permute.xlu0 %558
        %562 = vset.pattern.permute.xlu0 0
        %563 = vperm.xlu0 %562, %v553
        %v564 = vpop.permute.xlu0 %563
        %567 = vset.pattern.permute.xlu0 0
        %568 = vperm.xlu0 %567, %v554
        %v569 = vpop.permute.xlu0 %568
        %572 = vset.pattern.permute.xlu0 0
        %573 = vperm.xlu0 %572, %v555
        %v574 = vpop.permute.xlu0 %573
        %vm576 = vcmask 261120
        %v578 = vsel %vm576, %v548, 0
        %v581 = vsel %vm576, %v549, 0
        %v584 = vsel %vm576, %v550, 0
        %v587 = vsel %vm576, %v551, 0
        %589 = vmatprep.subr.mxu0 0.0
        %590 = vmatpush1.msra.mxu0 %v544
        %591 = vmatprep.subr.mxu0 0.0
        %592 = vmatpush1.msra.mxu0 %v545
        %593 = vmatprep.subr.mxu0 0.0
        %594 = vmatpush1.msra.mxu0 %v546
        %595 = vmatprep.subr.mxu0 0.0
        %596 = vmatpush1.msra.mxu0 %v547
        %597 = vmatprep.subr.mxu0 0.0
        %598 = vmatpush1.msra.mxu0 0.0
        %599 = vmatprep.subr.mxu0 0.0
        %600 = vmatpush1.msra.mxu0 0.0
        %601 = vmatprep.subr.mxu0 0.0
        %602 = vmatpush1.msra.mxu0 0.0
        %603 = vmatprep.subr.mxu0 0.0
        %604 = vmatpush1.msra.mxu0 0.0
        %605 = vmatprep.subr.mxu0 0.0
        %606 = vmatpush1.msra.mxu0 0.0
        %607 = vmatprep.subr.mxu0 0.0
        %608 = vmatpush1.msra.mxu0 0.0
        %609 = vmatprep.subr.mxu0 0.0
        %610 = vmatpush1.msra.mxu0 0.0
        %611 = vmatprep.subr.mxu0 0.0
        %612 = vmatpush1.msra.mxu0 0.0
        %613 = vmatprep.subr.mxu0 0.0
        %614 = vmatpush1.msra.mxu0 0.0
        %615 = vmatprep.subr.mxu0 0.0
        %616 = vmatpush1.msra.mxu0 0.0
        %617 = vmatprep.subr.mxu0 0.0
        %618 = vmatpush1.msra.mxu0 0.0
        %619 = vmatprep.subr.mxu0 0.0
        %620 = vmatpush1.msra.mxu0 0.0
        %621 = vmatprep.subr.mxu0 0.0
        %622 = vmatpush1.msra.mxu0 0.0
        %623 = vmatprep.subr.mxu0 0.0
        %624 = vmatpush1.msra.mxu0 0.0
        %625 = vmatprep.subr.mxu0 0.0
        %626 = vmatpush1.msra.mxu0 0.0
        %627 = vmatprep.subr.mxu0 0.0
        %628 = vmatpush1.msra.mxu0 0.0
        %629 = vmatprep.subr.mxu0 0.0
        %630 = vmatpush1.msra.mxu0 0.0
        %631 = vmatprep.subr.mxu0 0.0
        %632 = vmatpush1.msra.mxu0 0.0
        %633 = vmatprep.subr.mxu0 0.0
        %634 = vmatpush1.msra.mxu0 0.0
        %635 = vmatprep.subr.mxu0 0.0
        %636 = vmatpush1.msra.mxu0 0.0
        %637 = vmatprep.subr.mxu0 0.0
        %638 = vmatpush1.msra.mxu0 0.0
        %639 = vmatprep.subr.mxu0 0.0
        %640 = vmatpush1.msra.mxu0 0.0
        %641 = vmatprep.subr.mxu0 0.0
        %642 = vmatpush1.msra.mxu0 0.0
        %643 = vmatprep.subr.mxu0 0.0
        %644 = vmatpush1.msra.mxu0 0.0
        %645 = vmatprep.subr.mxu0 0.0
        %646 = vmatpush1.msra.mxu0 0.0
        %647 = vmatprep.subr.mxu0 0.0
        %648 = vmatpush1.msra.mxu0 0.0
        %649 = vmatprep.subr.mxu0 0.0
        %650 = vmatpush1.msra.mxu0 0.0
        %651 = vmatprep.subr.mxu0 0.0
        %652 = vmatpush1.msra.mxu0 0.0
        %653 = vmatprep.mubr.f32.mxu0 0.0
        %654 = vmatmul.mubr.f32.gmra.mrb[0].mxu0 %v578
        %v655 = vpop.f32.mrb[0].mxu0
        %v656 = vadd.f32 %v559, %v655
        %v657 = vpop.f32.mrb[0].mxu0
        %658 = vmatprep.mubr.f32.mxu0 0.0
        %659 = vmatmul.mubr.f32.gmra.mrb[0].mxu0 %v581
        %v660 = vpop.f32.mrb[0].mxu0
        %v661 = vadd.f32 %v564, %v660
        %v662 = vpop.f32.mrb[0].mxu0
        %663 = vmatprep.mubr.f32.mxu0 0.0
        %664 = vmatmul.mubr.f32.gmra.mrb[0].mxu0 %v584
        %v665 = vpop.f32.mrb[0].mxu0
        %v666 = vadd.f32 %v569, %v665
        %v667 = vpop.f32.mrb[0].mxu0
        %668 = vmatprep.mubr.f32.mxu0 0.0
        %669 = vmatmul.mubr.f32.gmra.mrb[0].mxu0 %v587
        %v670 = vpop.f32.mrb[0].mxu0
        %v671 = vadd.f32 %v574, %v670
        %v672 = vpop.f32.mrb[0].mxu0
        %673 = vdwg.mxu0
        %v674 = vtanh.pop %v656
        %v675 = vtanh.pop %v661
        %v676 = vtanh.pop %v666
        %v677 = vtanh.pop %v671
        %v678 = vld [vmem:[%s5] sm:$0xff]
        %v679 = vld [vmem:[%s5 + $0x8] sm:$0xff]
        %v680 = vld [vmem:[%s5 + $0x10] sm:$0xff]
        %v681 = vld [vmem:[%s5 + $0x18] sm:$0xff]
        %v682 = vld [vmem:[%s6] sm:$0xff]
        %v683 = vld [vmem:[%s6 + $0x8] sm:$0xff]
        %v684 = vld [vmem:[%s6 + $0x10] sm:$0xff]
        %v685 = vld [vmem:[%s6 + $0x18] sm:$0xff]
        %687 = vset.pattern.permute.xlu0 0
        %688 = vperm.xlu0 %687, %v682
        %v689 = vpop.permute.xlu0 %688
        %692 = vset.pattern.permute.xlu0 0
        %693 = vperm.xlu0 %692, %v683
        %v694 = vpop.permute.xlu0 %693
        %697 = vset.pattern.permute.xlu0 0
        %698 = vperm.xlu0 %697, %v684
        %v699 = vpop.permute.xlu0 %698
        %702 = vset.pattern.permute.xlu0 0
        %703 = vperm.xlu0 %702, %v685
        %v704 = vpop.permute.xlu0 %703
        %v707 = vsel %vm576, %v678, 0
        %v710 = vsel %vm576, %v679, 0
        %v713 = vsel %vm576, %v680, 0
        %v716 = vsel %vm576, %v681, 0
        %718 = vmatprep.subr.mxu0 0.0
        %719 = vmatpush1.msra.mxu0 %v674
        %720 = vmatprep.subr.mxu0 0.0
        %721 = vmatpush1.msra.mxu0 %v675
        %722 = vmatprep.subr.mxu0 0.0
        %723 = vmatpush1.msra.mxu0 %v676
        %724 = vmatprep.subr.mxu0 0.0
        %725 = vmatpush1.msra.mxu0 %v677
        %726 = vmatprep.subr.mxu0 0.0
        %727 = vmatpush1.msra.mxu0 0.0
        %728 = vmatprep.subr.mxu0 0.0
        %729 = vmatpush1.msra.mxu0 0.0
        %730 = vmatprep.subr.mxu0 0.0
        %731 = vmatpush1.msra.mxu0 0.0
        %732 = vmatprep.subr.mxu0 0.0
        %733 = vmatpush1.msra.mxu0 0.0
        %734 = vmatprep.subr.mxu0 0.0
        %735 = vmatpush1.msra.mxu0 0.0
        %736 = vmatprep.subr.mxu0 0.0
        %737 = vmatpush1.msra.mxu0 0.0
        %738 = vmatprep.subr.mxu0 0.0
        %739 = vmatpush1.msra.mxu0 0.0
        %740 = vmatprep.subr.mxu0 0.0
        %741 = vmatpush1.msra.mxu0 0.0
        %742 = vmatprep.subr.mxu0 0.0
        %743 = vmatpush1.msra.mxu0 0.0
        %744 = vmatprep.subr.mxu0 0.0
        %745 = vmatpush1.msra.mxu0 0.0
        %746 = vmatprep.subr.mxu0 0.0
        %747 = vmatpush1.msra.mxu0 0.0
        %748 = vmatprep.subr.mxu0 0.0
        %749 = vmatpush1.msra.mxu0 0.0
        %750 = vmatprep.subr.mxu0 0.0
        %751 = vmatpush1.msra.mxu0 0.0
        %752 = vmatprep.subr.mxu0 0.0
        %753 = vmatpush1.msra.mxu0 0.0
        %754 = vmatprep.subr.mxu0 0.0
        %755 = vmatpush1.msra.mxu0 0.0
        %756 = vmatprep.subr.mxu0 0.0
        %757 = vmatpush1.msra.mxu0 0.0
        %758 = vmatprep.subr.mxu0 0.0
        %759 = vmatpush1.msra.mxu0 0.0
        %760 = vmatprep.subr.mxu0 0.0
        %761 = vmatpush1.msra.mxu0 0.0
        %762 = vmatprep.subr.mxu0 0.0
        %763 = vmatpush1.msra.mxu0 0.0
        %764 = vmatprep.subr.mxu0 0.0
        %765 = vmatpush1.msra.mxu0 0.0
        %766 = vmatprep.subr.mxu0 0.0
        %767 = vmatpush1.msra.mxu0 0.0
        %768 = vmatprep.subr.mxu0 0.0
        %769 = vmatpush1.msra.mxu0 0.0
        %770 = vmatprep.subr.mxu0 0.0
        %771 = vmatpush1.msra.mxu0 0.0
        %772 = vmatprep.subr.mxu0 0.0
        %773 = vmatpush1.msra.mxu0 0.0
        %774 = vmatprep.subr.mxu0 0.0
        %775 = vmatpush1.msra.mxu0 0.0
        %776 = vmatprep.subr.mxu0 0.0
        %777 = vmatpush1.msra.mxu0 0.0
        %778 = vmatprep.subr.mxu0 0.0
        %779 = vmatpush1.msra.mxu0 0.0
        %780 = vmatprep.subr.mxu0 0.0
        %781 = vmatpush1.msra.mxu0 0.0
        %782 = vmatprep.mubr.f32.mxu0 0.0
        %783 = vmatmul.mubr.f32.gmra.mrb[0].mxu0 %v707
        %v784 = vpop.f32.mrb[0].mxu0
        %v785 = vadd.f32 %v689, %v784
        %v786 = vpop.f32.mrb[0].mxu0
        %787 = vmatprep.mubr.f32.mxu0 0.0
        %788 = vmatmul.mubr.f32.gmra.mrb[0].mxu0 %v710
        %v789 = vpop.f32.mrb[0].mxu0
        %v790 = vadd.f32 %v694, %v789
        %v791 = vpop.f32.mrb[0].mxu0
        %792 = vmatprep.mubr.f32.mxu0 0.0
        %793 = vmatmul.mubr.f32.gmra.mrb[0].mxu0 %v713
        %v794 = vpop.f32.mrb[0].mxu0
        %v795 = vadd.f32 %v699, %v794
        %v796 = vpop.f32.mrb[0].mxu0
        %797 = vmatprep.mubr.f32.mxu0 0.0
        %798 = vmatmul.mubr.f32.gmra.mrb[0].mxu0 %v716
        %v799 = vpop.f32.mrb[0].mxu0
        %v800 = vadd.f32 %v704, %v799
        %v801 = vpop.f32.mrb[0].mxu0
        %802 = vdwg.mxu0
        %v803 = vtanh.pop %v785
        %v804 = vtanh.pop %v790
        %v805 = vtanh.pop %v795
        %v806 = vtanh.pop %v800
        %v807 = vld [vmem:[%s7] sm:$0xff]
        %v808 = vld [vmem:[%s7 + $0x8] sm:$0xff]
        %v809 = vld [vmem:[%s7 + $0x10] sm:$0xff]
        %v810 = vld [vmem:[%s7 + $0x18] sm:$0xff]
        %812 = vset.pattern.permute.xlu0 0
        %813 = vperm.xlu0 %812, %v807
        %v814 = vpop.permute.xlu0 %813
        %817 = vset.pattern.permute.xlu0 0
        %818 = vperm.xlu0 %817, %v808
        %v819 = vpop.permute.xlu0 %818
        %822 = vset.pattern.permute.xlu0 0
        %823 = vperm.xlu0 %822, %v809
        %v824 = vpop.permute.xlu0 %823
        %827 = vset.pattern.permute.xlu0 0
        %828 = vperm.xlu0 %827, %v810
        %v829 = vpop.permute.xlu0 %828
        %v831 = vmul.f32 %v803, %v814
        %v832 = vmul.f32 %v804, %v819
        %v833 = vmul.f32 %v805, %v824
        %v834 = vmul.f32 %v806, %v829
        %v835 = vadd.f32 %v831, %v832
        %v836 = vadd.f32 %v835, %v833
        %v837 = vadd.f32 %v836, %v834
        %v838 = vrot.slane %v837, 4
        %v839 = vadd.f32 %v837, %v838
        %v840 = vrot.slane %v839, 2
        %v841 = vadd.f32 %v839, %v840
        %v842 = vrot.slane %v841, 1
        %v843 = vadd.f32 %v841, %v842
        %v844 = vld [vmem:[#allocation2] sm:$0x1]
        %846 = vset.pattern.permute.xlu0 0
        %847 = vperm.xlu0 %846, %v844
        %v848 = vpop.permute.xlu0 %847
        %v850 = vlaneseq
        %v851 = vshrl.u32 %v850, 7
        %v852 = vsub.s32 0, %v851
        %v853 = vrot.slane %v848, %v852
        %v854 = vadd.f32 %v843, %v853
        %855 = vst [vmem:[%s339] sm:$0x1] %v854
        %s856 = sand.u32 %s227, 1
        %s857 = scalar_lea.sflag [#allocation4], %s856
        %s858 = sand.u32 %s227, 1
        %s859 = scalar_lea.vmem [#allocation3], %s858
        // Predicated region
        $region57: #{value_network.1} parent=55 // pred_check
          %p860 = pneg %p237
        $region58: #{value_network.1} parent=55 // pred_check_branch
          %862 = sbr.rel (%p860) target = $region60
        $region59: #{value_network.1} parent=55 // pred_region
          %s864 = ssub.s32 16, 16
          %865 = vsyncadd %s857, %s864
          %s866 = smul.addr %s25, 16
          %s867 = scalar_lea.hbm %s9, %s866
          %s869 = sshll.u32 %s859, 4
          %s870 = int_to_ptr.vmem [resolvable:$true] %s869
          %872 = dma.vmem_to_hbm [thread:$0]  %s870, 16, %s867, %s857
        $region60: #{value_network.1} parent=55 // pred_fallthru
          _
      $region56: #{value_network.1} parent=5 // pred_fallthru
        _
      %p873 = scmp.le.s32.totalorder 2, %s20
      // Predicated region
      $region61: #{value_network.1} parent=5 // pred_check
        %p874 = pneg %p873
      $region62: #{value_network.1} parent=5 // pred_check_branch
        %876 = sbr.rel (%p874) target = $region64
      $region63: #{value_network.1} parent=5 // pred_region
        %s877 = ssub.s32 %s20, 2
        // Predicated region
        $region65: #{value_network.1} parent=63 // pred_check
          %p878 = pneg %p243
        $region66: #{value_network.1} parent=63 // pred_check_branch
          %880 = sbr.rel (%p878) target = $region68
        $region67: #{value_network.1} parent=63 // pred_region
          %s881 = sand.u32 %s228, 1
          %s882 = scalar_lea.sflag [#allocation4], %s881
          %s883 = sand.u32 %s228, 1
          %s884 = scalar_lea.vmem [#allocation3], %s883
          %885 = dma.done %s882, 16
        $region68: #{value_network.1} parent=63 // pred_fallthru
          _
      $region64: #{value_network.1} parent=5 // pred_fallthru
        _
    $region6: #{value_network.1} parent=1 // loop_footer
      %s24 = sadd.s32 1, %s20
    $region7: #{value_network.1} parent=1 // loop_footer_branch
      %19 = sbr.rel target = $region3
    $region8: #{value_network.1} parent=1 // loop_exit
      _
    %886 = vsyncpa [#allocation4], 1
    %s887 = scalar_lea.sflag [#allocation4], 1
    %888 = vsyncpa %s887, 1

</llo_original>
